<compile_context>
chip_gen: v7x
topology: tpu7x:2x2x1
jax: 0.10.0
libtpu: 0.0.40
codegen_flags: <defaults>
</compile_context>

<pallas_src>
import math

import jax
import jax.numpy as jnp
from jax.experimental import pallas as pl
from jax.experimental.pallas import tpu as pltpu

LEVELS = [float(i) for i in range(-2, 3)]           # [-2, -1, 0, 1, 2]
SIGMA = 1.0
_C1 = math.exp(-SIGMA * 1.0)                         # exp(-sigma * 1^2)
_C2 = math.exp(-SIGMA * 4.0)                         # exp(-sigma * 2^2)
_XCLIP = 16.0                                        # |x| > 16: softmax saturated

_FWD_BLOCK_BYTES = 4 * 1024 * 1024    # 2 streams x 2 buffers x 4 MiB = 16 MiB
_BWD_BLOCK_BYTES = 2 * 1024 * 1024    # 3 streams x 2 buffers x 2 MiB = 12 MiB
_VMEM_LIMIT_BYTES = 32 * 1024 * 1024  # above v5e's 16 MiB default, safe on v7x


# --------------------------------------------------------------------------
# Kernels
# --------------------------------------------------------------------------
def _quant_kernel(x_ref, q_ref):
    """Hard quantization (forward values)."""
    x = x_ref[...].astype(jnp.float32)
    q = jnp.clip(jnp.ceil(x - 0.5), LEVELS[0], LEVELS[-1])
    q_ref[...] = q.astype(q_ref.dtype)


def _refined_recip(v):
    """EUP approx reciprocal + 2 Newton steps (~f32-exact), off the VALU divide path."""
    r = pl.reciprocal(v, approx=True)
    r = r * (2.0 - v * r)
    r = r * (2.0 - v * r)
    return r


def _grad_kernel(x_ref, g_ref, dx_ref):
    """Backward: dx = g * d(soft)/dx = g * 2*sigma*(E[l^2] - E[l]^2)."""
    x = x_ref[...].astype(jnp.float32)
    g = g_ref[...].astype(jnp.float32)

    t = (2.0 * SIGMA) * jnp.clip(x, -_XCLIP, _XCLIP)
    b = jnp.exp(t)
    ib = _refined_recip(b)
    b2 = b * b
    ib2 = ib * ib

    sum1 = b + ib
    dif1 = b - ib
    sum2 = b2 + ib2
    dif2 = b2 - ib2

    denom = 1.0 + _C1 * sum1 + _C2 * sum2
    num_mean = _C1 * dif1 + 2.0 * _C2 * dif2
    num_msq = _C1 * sum1 + 4.0 * _C2 * sum2

    r = _refined_recip(denom)
    mean = num_mean * r
    msq = num_msq * r
    dsoft = (2.0 * SIGMA) * (msq - mean * mean)

    dx_ref[...] = (g * dsoft).astype(dx_ref.dtype)


# --------------------------------------------------------------------------
# Plain-jnp fallbacks (used only for a <128-element ragged tail)
# --------------------------------------------------------------------------
def _quant_jnp(x):
    xf = x.astype(jnp.float32)
    return jnp.clip(jnp.ceil(xf - 0.5), LEVELS[0], LEVELS[-1])


def _grad_jnp(x, g):
    xf = x.astype(jnp.float32)
    gf = g.astype(jnp.float32)
    t = (2.0 * SIGMA) * jnp.clip(xf, -_XCLIP, _XCLIP)
    b = jnp.exp(t)
    ib = jnp.exp(-t)
    b2, ib2 = b * b, ib * ib
    sum1, dif1 = b + ib, b - ib
    sum2, dif2 = b2 + ib2, b2 - ib2
    denom = 1.0 + _C1 * sum1 + _C2 * sum2
    mean = (_C1 * dif1 + 2.0 * _C2 * dif2) / denom
    msq = (_C1 * sum1 + 4.0 * _C2 * sum2) / denom
    return gf * (2.0 * SIGMA) * (msq - mean * mean)


# --------------------------------------------------------------------------
# Elementwise launcher
# --------------------------------------------------------------------------
def _lane_width(n):
    for w in (1024, 512, 256, 128):
        if n % w == 0:
            return w
    return 128  # unreachable for n % 128 == 0


def _launch_elementwise(kernel, views, out_dtype, target_block_bytes):
    """views: equal-shape (M, lanes) arrays; returns one (M, lanes) array."""
    M, lanes = views[0].shape
    itemsize = max(jnp.dtype(a.dtype).itemsize for a in views)
    rows_target = max(8, (target_block_bytes // (lanes * itemsize)) // 8 * 8)
    if M <= 8:
        block_rows = M                           # full-dim block (tiny input)
    else:
        # Cap the block so realistic sizes get >= ~4 grid steps: keeps the
        # BlockSpec pipeline busy and gives both v7x TensorCores work.
        cap = max(8, (M // 4) // 8 * 8)
        block_rows = min(rows_target, cap)
    grid = (pl.cdiv(M, block_rows),)
    spec = pl.BlockSpec((block_rows, lanes), lambda i: (i, 0))

    return pl.pallas_call(
        kernel,
        out_shape=jax.ShapeDtypeStruct((M, lanes), out_dtype),
        grid_spec=pltpu.PrefetchScalarGridSpec(
            num_scalar_prefetch=0,
            grid=grid,
            in_specs=[spec] * len(views),
            out_specs=spec,
        ),
        compiler_params=pltpu.CompilerParams(
            dimension_semantics=("parallel",),
            vmem_limit_bytes=_VMEM_LIMIT_BYTES,
        ),
    )(*views)


def _elementwise(kernel, jnp_fallback, inputs, out_dtype, target_block_bytes):
    """Apply an elementwise op to arbitrarily shaped (equal-shape) inputs.

    128-aligned bulk -> Pallas kernel on a lane-dense 2-D view; a possible
    <128-element ragged tail -> plain jnp. No jnp.pad / full-array slicing
    in the common aligned case.
    """
    shape = inputs[0].shape
    flats = [a.reshape(-1) for a in inputs]
    n = flats[0].shape[0]
    n_bulk = (n // 128) * 128

    tail_out = None
    if n_bulk < n:
        tail_out = jnp_fallback(*[f[n_bulk:] for f in flats]).astype(out_dtype)
    if n_bulk == 0:
        return tail_out.reshape(shape)

    bulk = flats if n_bulk == n else [f[:n_bulk] for f in flats]
    lanes = _lane_width(n_bulk)
    views = [f.reshape(n_bulk // lanes, lanes) for f in bulk]
    out2 = _launch_elementwise(kernel, views, out_dtype, target_block_bytes)

    if tail_out is None:
        return out2.reshape(shape)
    return jnp.concatenate([out2.reshape(-1), tail_out]).reshape(shape)


# --------------------------------------------------------------------------
# Public op (matches PyTorch Quantizer.forward: values = quant, grad via soft)
# --------------------------------------------------------------------------
def _quant_impl(x):
    return _elementwise(_quant_kernel, _quant_jnp, [x], x.dtype, _FWD_BLOCK_BYTES)


def _grad_impl(x, g):
    return _elementwise(_grad_kernel, _grad_jnp, [x, g], x.dtype, _BWD_BLOCK_BYTES)


@jax.custom_vjp
def quantizer_forward(x):
    """Forward values = hard quantization to the nearest level (torch.min
    tie-breaking); gradient flows through the softmax surrogate `soft`, exactly
    like the PyTorch module (output.data = quant)."""
    return _quant_impl(x)


def _quantizer_vjp_fwd(x):
    return _quant_impl(x), x


def _quantizer_vjp_bwd(x, g):
    return (_grad_impl(x, g),)


quantizer_forward.defvjp(_quantizer_vjp_fwd, _quantizer_vjp_bwd)


# --------------------------------------------------------------------------
# Pure-JAX references for validation
# --------------------------------------------------------------------------
def _reference_soft(x):
    levels = jnp.asarray(LEVELS, dtype=jnp.float32)
    dist = (x[..., None].astype(jnp.float32) - levels) ** 2
    return jnp.sum(levels * jax.nn.softmax(-SIGMA * dist, axis=-1), axis=-1)


def _reference_quant(x):
    levels = jnp.asarray(LEVELS, dtype=jnp.float32)
    dist = (x[..., None].astype(jnp.float32) - levels) ** 2
    return levels[jnp.argmin(dist, axis=-1)].astype(x.dtype)


if __name__ == "__main__":
    key = jax.random.PRNGKey(0)
    kx, kg, kx2, kg2 = jax.random.split(key, 4)

    # Typical use: quantizing a conv feature map (NCHW in PyTorch).
    x = 2.5 * jax.random.normal(kx, (2, 4, 16, 16), dtype=jnp.float32)
    quant = quantizer_forward(x)
    jax.block_until_ready(quant)
    assert quant.shape == x.shape
    assert jnp.array_equal(quant, _reference_quant(x)), "hard quantization mismatch"

    # Gradient path: custom_vjp backward must equal d(soft)/dx * cotangent.
    g = jax.random.normal(kg, x.shape, dtype=jnp.float32)
    _, vjp_fn = jax.vjp(quantizer_forward, x)
    (dx,) = vjp_fn(g)
    jax.block_until_ready(dx)
    dx_ref = jax.vjp(_reference_soft, x)[1](g)[0]
    assert jnp.allclose(dx, dx_ref, atol=1e-4, rtol=1e-3), "soft-gradient mismatch"

    # Medium case: exercises the multi-step "parallel" grid / pipelining.
    x2 = 3.0 * jax.random.normal(kx2, (4, 8, 32, 32), dtype=jnp.float32)
    g2 = jax.random.normal(kg2, x2.shape, dtype=jnp.float32)
    q2, vjp2 = jax.vjp(quantizer_forward, x2)
    (dx2,) = vjp2(g2)
    jax.block_until_ready(dx2)
    assert jnp.array_equal(q2, _reference_quant(x2)), "medium quant mismatch"
    assert jnp.allclose(dx2, jax.vjp(_reference_soft, x2)[1](g2)[0],
                        atol=1e-4, rtol=1e-3), "medium gradient mismatch"

    # Tie points, routed through the kernel (one full 128-lane row).
    ties = jnp.asarray(
        [-2.7, -1.5, -1.49, -0.5, -0.49, 0.0, 0.49, 0.5, 1.49, 1.5, 2.7, 0.51],
        dtype=jnp.float32,
    )
    x_tie = jnp.concatenate(
        [ties, jnp.linspace(-3.0, 3.0, 128 - ties.shape[0], dtype=jnp.float32)]
    )
    q_tie = quantizer_forward(x_tie)
    jax.block_until_ready(q_tie)
    assert jnp.array_equal(q_tie, _reference_quant(x_tie)), "tie-point mismatch"

    # Ragged element count (n % 128 != 0): aligned bulk via kernel, tail via jnp.
    x_rag = 2.0 * jax.random.normal(kx, (1283,), dtype=jnp.float32)
    g_rag = jax.random.normal(kg, (1283,), dtype=jnp.float32)
    q_rag, vjp_rag = jax.vjp(quantizer_forward, x_rag)
    (dx_rag,) = vjp_rag(g_rag)
    jax.block_until_ready(dx_rag)
    assert jnp.array_equal(q_rag, _reference_quant(x_rag)), "ragged quant mismatch"
    assert jnp.allclose(dx_rag, jax.vjp(_reference_soft, x_rag)[1](g_rag)[0],
                        atol=1e-4, rtol=1e-3), "ragged gradient mismatch"

    print("KERNEL_OK")
</pallas_src>

<mosaic_0001>
module attributes {stable_mosaic.version = 11 : i64} {
  func.func @_quant_kernel(%arg0: i32, %arg1: memref<2x1024xf32, #tpu.memory_space<vmem>>, %arg2: memref<2x1024xf32, #tpu.memory_space<vmem>>) attributes {dimension_semantics = [#tpu.dimension_semantics<parallel>], iteration_bounds = array<i64: 1>, scalar_prefetch = 0 : i64, scratch_operands = 0 : i64, tpu.core_type = #tpu.core_type<tc>, window_params = [{transform_indices = @transform_0, window_bounds = array<i64: 2, 1024>}, {transform_indices = @transform_1, window_bounds = array<i64: 2, 1024>}]} {
    %c0 = arith.constant 0 : index
    %c0_0 = arith.constant 0 : index
    %0 = vector.load %arg1[%c0, %c0_0] : memref<2x1024xf32, #tpu.memory_space<vmem>>, vector<2x1024xf32>
    %cst = arith.constant 5.000000e-01 : f32
    %1 = vector.broadcast %cst : f32 to vector<2x1024xf32>
    %2 = arith.subf %0, %1 : vector<2x1024xf32>
    %3 = math.ceil %2 : vector<2x1024xf32>
    %cst_1 = arith.constant -2.000000e+00 : f32
    %cst_2 = arith.constant 2.000000e+00 : f32
    %4 = vector.broadcast %cst_1 : f32 to vector<2x1024xf32>
    %5 = arith.maximumf %4, %3 : vector<2x1024xf32>
    %6 = vector.broadcast %cst_2 : f32 to vector<2x1024xf32>
    %7 = arith.minimumf %6, %5 : vector<2x1024xf32>
    %c0_3 = arith.constant 0 : index
    %c0_4 = arith.constant 0 : index
    %8 = vector.load %arg2[%c0_3, %c0_4] : memref<2x1024xf32, #tpu.memory_space<vmem>>, vector<2x1024xf32>
    tpu.vector_store %arg2[%c0_3, %c0_4], %7 {strides = array<i32>} : memref<2x1024xf32, #tpu.memory_space<vmem>>, vector<2x1024xf32>,
    return
  }
  func.func @transform_0(%arg0: i32) -> (i32, i32) {
    %c0_i32 = arith.constant 0 : i32
    %c0_i32_0 = arith.constant 0 : i32
    return %arg0, %c0_i32 : i32, i32
  }
  func.func @transform_1(%arg0: i32) -> (i32, i32) {
    %c0_i32 = arith.constant 0 : i32
    %c0_i32_0 = arith.constant 0 : i32
    return %arg0, %c0_i32 : i32, i32
  }
}

</mosaic_0001>

<llo_original>
// kernel: tpu_custom_call.1
$region0: #{tpu_custom_call.1}
  #allocation0 [shape = 'u32[]', space=smem, size = 0x4, offset = 0x4, fixed_abs, tag = 'smem constant byte address 0x4 - core index']
  #allocation1 [shape = 'u32[144,128]{1,0:T(1,128)}', space=vmem, size = 0x12000, scoped, tag = 'internal scratch']
  %s0 = inlined_call_operand.hbm [shape: f32[2,1024], index: 0, kind: input, shape index: {}]
  %s1 = inlined_call_operand.hbm [shape: f32[2,1024], index: 1, kind: output, shape index: {}]
  %s2 = sld [smem:[#allocation0]]
  $region18: #{tpu_custom_call.1} parent=0
    _
  %s4 = ssub.s32 1, %s2
  %s5 = scalar_select 0, %s4, %s2
  $region1: #{tpu_custom_call.1} parent=0
    #allocation2 [shape = 'u8[8192]{0}', space=vmem, size = 0x2000, scoped, tag = 'input window, operand 0, single buffered']
    #allocation3 [shape = 's32[1]{0}', space=sflag, size = 0x4, scoped, tag = 'scoped memory for tpu_custom_call.1']
    #allocation4 [shape = 's32[1]{0}', space=sflag, size = 0x4, scoped, tag = 'scoped memory for tpu_custom_call.1']
    #allocation5 [shape = 'u8[8192]{0}', space=vmem, size = 0x2000, scoped, tag = 'output window, operand 0, single buffered']
    %6 = vsyncpa [#allocation3], 0
    %7 = vsyncpa [#allocation4], 0
    // Predicated region
    $region2: #{tpu_custom_call.1} parent=1 // pred_check
      _
    $region3: #{tpu_custom_call.1} parent=1 // pred_check_branch
      %9 = sbr.rel (0) target = $region5
    $region4: #{tpu_custom_call.1} parent=1 // pred_region
      %s11 = ssub.s32 256, 256
      %12 = vsyncadd [#allocation3], %s11
      %s14 = sshll.u32 [#allocation2], 4
      %s15 = int_to_ptr.vmem [resolvable:$true] %s14
      %17 = dma.hbm_to_vmem [thread:$0]  %s0, 256, %s15, [#allocation3]
    $region5: #{tpu_custom_call.1} parent=1 // pred_fallthru
      _
    // Predicated region
    $region6: #{tpu_custom_call.1} parent=1 // pred_check
      _
    $region7: #{tpu_custom_call.1} parent=1 // pred_check_branch
      %19 = sbr.rel (0) target = $region9
    $region8: #{tpu_custom_call.1} parent=1 // pred_region
      %20 = dma.done [#allocation3], 256
    $region9: #{tpu_custom_call.1} parent=1 // pred_fallthru
      _
    %v21 = vld [vmem:[#allocation2] sm:$0xff]
    %v22 = vld [vmem:[#allocation2 + $0x8] sm:$0xff]
    %v23 = vsub.f32 %v21, 0.5
    %v24 = vsub.f32 %v22, 0.5
    %v25 = vceil.f32 %v23
    %v26 = vceil.f32 %v24
    %v27 = vmax.f32 %v25, -2.0
    %v28 = vmax.f32 %v26, -2.0
    %v29 = vmin.f32 %v27, 2.0
    %v30 = vmin.f32 %v28, 2.0
    %31 = vst [vmem:[#allocation5] sm:$0xff] %v29
    %32 = vst [vmem:[#allocation5 + $0x8] sm:$0xff] %v30
    // Predicated region
    $region10: #{tpu_custom_call.1} parent=1 // pred_check
      _
    $region11: #{tpu_custom_call.1} parent=1 // pred_check_branch
      %34 = sbr.rel (0) target = $region13
    $region12: #{tpu_custom_call.1} parent=1 // pred_region
      %s36 = ssub.s32 256, 256
      %37 = vsyncadd [#allocation4], %s36
      %s39 = sshll.u32 [#allocation5], 4
      %s40 = int_to_ptr.vmem [resolvable:$true] %s39
      %42 = dma.vmem_to_hbm [thread:$0]  %s40, 256, %s1, [#allocation4]
    $region13: #{tpu_custom_call.1} parent=1 // pred_fallthru
      _
    // Predicated region
    $region14: #{tpu_custom_call.1} parent=1 // pred_check
      _
    $region15: #{tpu_custom_call.1} parent=1 // pred_check_branch
      %44 = sbr.rel (0) target = $region17
    $region16: #{tpu_custom_call.1} parent=1 // pred_region
      %45 = dma.done [#allocation4], 256
    $region17: #{tpu_custom_call.1} parent=1 // pred_fallthru
      _
    %46 = vsyncpa [#allocation3], 1
    %47 = vsyncpa [#allocation4], 1

</llo_original>
